<compile_context>
chip_gen: v6e
topology: v6e:2x2x1
jax: 0.10.0
libtpu: 0.0.40
codegen_flags: <defaults>
</compile_context>

<pallas_src>
import functools

import jax
import jax.numpy as jnp
from jax import lax
from jax.experimental import pallas as pl
from jax.experimental.pallas import tpu as pltpu


def _round_up(x, m):
    return -(-x // m) * m


def _vmem_capacity_bytes():
    """Device VMEM capacity; conservative v7x default if the query fails."""
    try:
        info = pltpu.get_tpu_info()
        cap = getattr(info, "vmem_capacity_bytes", None)
        if cap:
            return int(cap)
    except Exception:
        pass
    return 64 * 1024 * 1024


def _mlloss_kernel(emb_ref, ker_ref, out_ref, inv_e_sc, *, s, persist_inv_e):
    # emb_ref: (tm, D) raw embeddings block (full D, resident over inner j)
    # ker_ref: (D, tn) raw class-kernel block (full D, streamed)
    # inv_e_sc: (tm, 1) f32 scratch holding s / ||emb_row||_2
    clip_hi = abs(float(s))

    def row_inv_norm():
        e32 = emb_ref[...].astype(jnp.float32)
        return lax.rsqrt(jnp.sum(e32 * e32, axis=1, keepdims=True)) * jnp.float32(s)

    if persist_inv_e:
        # Compute once per row-block sweep; scratch persists across inner j.
        @pl.when(pl.program_id(1) == 0)
        def _():
            inv_e_sc[...] = row_inv_norm()

        inv_e = inv_e_sc[...]
    else:
        # Single row block: recompute per step (cheap XLU/EUP, hidden under
        # MXU) so the j axis can be marked "parallel" for v7x dual-core.
        inv_e = row_inv_norm()

    # Column norms of the kernel block already in VMEM (per-column reduction).
    k32 = ker_ref[...].astype(jnp.float32)
    inv_k = lax.rsqrt(jnp.sum(k32 * k32, axis=0, keepdims=True))  # (1, tn)

    acc = jnp.dot(emb_ref[...], ker_ref[...], preferred_element_type=jnp.float32)
    scaled = acc * inv_e * inv_k
    # clamp(cos, -1, 1) * s  ==  clip(cos * s, -|s|, |s|)
    out_ref[...] = jnp.clip(scaled, -clip_hi, clip_hi).astype(out_ref.dtype)


def _select_tiles(N, C, D, in_bytes, vmem_cap, tm, tn):
    budget = int(0.55 * vmem_cap)  # leave headroom for pipelining buffers
    if tn is None:
        tn = 256 if C >= 256 else 128
    tn = _round_up(tn, 128)
    if tm is None:
        tm = 8
        for cand in (1024, 768, 512, 384, 256, 128, 64, 32, 16, 8):
            # per-step VMEM: double-buffered emb/ker blocks + out + scratch
            need = 2 * (cand * D + D * tn) * in_bytes + 2 * cand * tn * 4 + cand * 4
            if need <= budget:
                tm = cand
                break
    tm = _round_up(tm, 8)
    # Clamp to the problem size while keeping (sublane, lane) alignment.
    tm = min(tm, _round_up(N, 8))
    tn = min(tn, _round_up(C, 128))
    return tm, tn


def ml_loss(embeddings, kernel, label=None, *, s=64.0, tm=None, tn=None,
            matmul_dtype=None):
    """Pallas implementation of MLLoss.forward.

    embeddings: [N, D], kernel: [D, C] -> [N, C] float32.
    `label` is accepted for parity with the PyTorch module but unused.
    matmul_dtype (e.g. jnp.bfloat16) optionally casts operands for bf16-native
    MXUs; precision-affecting, so off by default.
    Note: zero-norm rows/columns produce NaN (rsqrt(0)=inf), matching the
    PyTorch 0/0 behavior.
    """
    del label  # unused in the reference forward
    N, D = embeddings.shape
    D2, C = kernel.shape
    assert D == D2, "embedding dim mismatch"

    if matmul_dtype is not None:
        embeddings = embeddings.astype(matmul_dtype)
        kernel = kernel.astype(matmul_dtype)

    e_bytes = jnp.dtype(embeddings.dtype).itemsize
    k_bytes = jnp.dtype(kernel.dtype).itemsize
    in_bytes = max(e_bytes, k_bytes)

    vmem_cap = _vmem_capacity_bytes()
    tm, tn = _select_tiles(N, C, D, in_bytes, vmem_cap, tm, tn)

    gi = pl.cdiv(N, tm)
    gj = pl.cdiv(C, tn)
    persist_inv_e = gi > 1

    cost = pl.CostEstimate(
        flops=2 * N * D * C,
        transcendentals=int(N + gi * C),
        bytes_accessed=int(N * D * e_bytes + gi * D * C * k_bytes + N * C * 4),
    )

    dims = ("parallel", "arbitrary") if persist_inv_e else ("parallel", "parallel")

    out = pl.pallas_call(
        functools.partial(_mlloss_kernel, s=float(s), persist_inv_e=persist_inv_e),
        out_shape=jax.ShapeDtypeStruct((N, C), jnp.float32),
        grid_spec=pltpu.PrefetchScalarGridSpec(
            num_scalar_prefetch=0,
            grid=(gi, gj),
            in_specs=[
                pl.BlockSpec((tm, D), lambda i, j: (i, 0)),   # resident over j
                pl.BlockSpec((D, tn), lambda i, j: (0, j)),   # streamed
            ],
            out_specs=pl.BlockSpec((tm, tn), lambda i, j: (i, j)),
            scratch_shapes=[pltpu.VMEM((tm, 1), jnp.float32)],
        ),
        compiler_params=pltpu.CompilerParams(
            dimension_semantics=dims,
            vmem_limit_bytes=int(0.75 * vmem_cap),
        ),
        cost_estimate=cost,
    )(embeddings, kernel)
    return out


def ml_loss_reference(embeddings, kernel, s=64.0):
    """Pure-JAX reference mirroring the PyTorch module."""
    e = embeddings / jnp.linalg.norm(embeddings, axis=1, keepdims=True)
    k = kernel / jnp.linalg.norm(kernel, axis=0, keepdims=True)
    cos = jnp.clip(e @ k, -1.0, 1.0)
    return cos * s


if __name__ == "__main__":
    # Small, module-consistent shapes: batch=8, embed_dim=32, num_classes=128.
    N, D, C = 8, 32, 128
    key = jax.random.PRNGKey(0)
    k_emb, k_ker = jax.random.split(key)

    embeddings = jax.random.normal(k_emb, (N, D), dtype=jnp.float32)
    # Deterministic init for self.kernel ([embed_dim, num_classes]).
    kernel = jax.random.normal(k_ker, (D, C), dtype=jnp.float32) * 0.01

    out = ml_loss(embeddings, kernel, s=64.0)
    out = jax.block_until_ready(out)

    ref = ml_loss_reference(embeddings, kernel, s=64.0)
    assert out.shape == (N, C)
    assert jnp.allclose(out, ref, atol=1e-3, rtol=1e-4), "mismatch vs reference"

    print("KERNEL_OK")
</pallas_src>

<mosaic_0001>
module attributes {stable_mosaic.version = 11 : i64} {
  func.func @_mlloss_kernel(%arg0: i32, %arg1: i32, %arg2: memref<8x32xf32, #tpu.memory_space<vmem>>, %arg3: memref<32x128xf32, #tpu.memory_space<vmem>>, %arg4: memref<8x128xf32, #tpu.memory_space<vmem>>, %arg5: memref<8x1xf32, #tpu.memory_space<vmem>>) attributes {dimension_semantics = [#tpu.dimension_semantics<parallel>, #tpu.dimension_semantics<parallel>], iteration_bounds = array<i64: 1, 1>, scalar_prefetch = 0 : i64, scratch_operands = 1 : i64, tpu.core_type = #tpu.core_type<tc>, window_params = [{transform_indices = @transform_0, window_bounds = array<i64: 8, 32>}, {transform_indices = @transform_1, window_bounds = array<i64: 32, 128>}, {transform_indices = @transform_2, window_bounds = array<i64: 8, 128>}]} {
    %c0 = arith.constant 0 : index
    %c0_0 = arith.constant 0 : index
    %0 = vector.load %arg2[%c0, %c0_0] : memref<8x32xf32, #tpu.memory_space<vmem>>, vector<8x32xf32>
    %1 = arith.mulf %0, %0 : vector<8x32xf32>
    %cst = arith.constant dense<0.000000e+00> : vector<8xf32>
    %2 = vector.multi_reduction <add>, %1, %cst [1] : vector<8x32xf32> to vector<8xf32>
    %3 = vector.shape_cast %2 : vector<8xf32> to vector<8x1xf32>
    %4 = math.rsqrt %3 : vector<8x1xf32>
    %cst_1 = arith.constant 6.400000e+01 : f32
    %5 = vector.broadcast %cst_1 : f32 to vector<8x1xf32>
    %6 = arith.mulf %4, %5 : vector<8x1xf32>
    %c0_2 = arith.constant 0 : index
    %c0_3 = arith.constant 0 : index
    %7 = vector.load %arg3[%c0_2, %c0_3] : memref<32x128xf32, #tpu.memory_space<vmem>>, vector<32x128xf32>
    %8 = arith.mulf %7, %7 : vector<32x128xf32>
    %cst_4 = arith.constant dense<0.000000e+00> : vector<128xf32>
    %9 = vector.multi_reduction <add>, %8, %cst_4 [0] : vector<32x128xf32> to vector<128xf32>
    %10 = vector.shape_cast %9 : vector<128xf32> to vector<1x128xf32>
    %11 = math.rsqrt %10 : vector<1x128xf32>
    %c0_5 = arith.constant 0 : index
    %c0_6 = arith.constant 0 : index
    %12 = vector.load %arg2[%c0_5, %c0_6] : memref<8x32xf32, #tpu.memory_space<vmem>>, vector<8x32xf32>
    %c0_7 = arith.constant 0 : index
    %c0_8 = arith.constant 0 : index
    %13 = vector.load %arg3[%c0_7, %c0_8] : memref<32x128xf32, #tpu.memory_space<vmem>>, vector<32x128xf32>
    %cst_9 = arith.constant dense<0.000000e+00> : vector<8x128xf32>
    %14 = tpu.matmul %12, %13, %cst_9 {dimension_numbers = #tpu.dot_dimension_numbers<[1], [0], [0], [1], [0, 0, 1, 1], [], []>} : vector<8x32xf32>, vector<32x128xf32>, vector<8x128xf32> -> vector<8x128xf32>
    %15 = vector.broadcast %6 : vector<8x1xf32> to vector<8x128xf32>
    %16 = arith.mulf %14, %15 : vector<8x128xf32>
    %17 = vector.broadcast %11 : vector<1x128xf32> to vector<8x128xf32>
    %18 = arith.mulf %16, %17 : vector<8x128xf32>
    %cst_10 = arith.constant -6.400000e+01 : f32
    %cst_11 = arith.constant 6.400000e+01 : f32
    %19 = vector.broadcast %cst_10 : f32 to vector<8x128xf32>
    %20 = arith.maximumf %19, %18 : vector<8x128xf32>
    %21 = vector.broadcast %cst_11 : f32 to vector<8x128xf32>
    %22 = arith.minimumf %21, %20 : vector<8x128xf32>
    %c0_12 = arith.constant 0 : index
    %c0_13 = arith.constant 0 : index
    %23 = vector.load %arg4[%c0_12, %c0_13] : memref<8x128xf32, #tpu.memory_space<vmem>>, vector<8x128xf32>
    tpu.vector_store %arg4[%c0_12, %c0_13], %22 {strides = array<i32>} : memref<8x128xf32, #tpu.memory_space<vmem>>, vector<8x128xf32>,
    return
  }
  func.func @transform_0(%arg0: i32, %arg1: i32) -> (i32, i32) {
    %c0_i32 = arith.constant 0 : i32
    %c0_i32_0 = arith.constant 0 : i32
    return %arg0, %c0_i32 : i32, i32
  }
  func.func @transform_1(%arg0: i32, %arg1: i32) -> (i32, i32) {
    %c0_i32 = arith.constant 0 : i32
    %c0_i32_0 = arith.constant 0 : i32
    return %c0_i32, %arg1 : i32, i32
  }
  func.func @transform_2(%arg0: i32, %arg1: i32) -> (i32, i32) {
    %c0_i32 = arith.constant 0 : i32
    return %arg0, %arg1 : i32, i32
  }
}

</mosaic_0001>

<llo_original>
// kernel: tpu_custom_call.1
$region0: #{tpu_custom_call.1}
  #allocation0 [shape = 'u32[]', space=smem, size = 0x4, offset = 0x4, fixed_abs, tag = 'smem constant byte address 0x4 - core index']
  #allocation1 [shape = 'u32[144,128]{1,0:T(1,128)}', space=vmem, size = 0x12000, scoped, tag = 'internal scratch']
  #allocation2 [shape = 'f32[8,1]{1,0:T(8,128)}', space=vmem, size = 0x1000, scoped, tag = 'scratch operand']
  %s0 = inlined_call_operand.hbm [shape: f32[8,32], index: 0, kind: input, shape index: {}]
  %s1 = inlined_call_operand.hbm [shape: f32[32,128], index: 1, kind: input, shape index: {}]
  %s2 = inlined_call_operand.hbm [shape: f32[8,128], index: 2, kind: output, shape index: {}]
  %s3 = sld [smem:[#allocation0]]
  $region26: #{tpu_custom_call.1} parent=0
    _
  %s5 = ssub.s32 1, %s3
  %s6 = scalar_select 0, %s5, %s3
  $region1: #{tpu_custom_call.1} parent=0
    #allocation3 [shape = 'u8[4096]{0}', space=vmem, size = 0x1000, scoped, tag = 'input window, operand 0, single buffered']
    #allocation4 [shape = 's32[1]{0}', space=sflag, size = 0x4, scoped, tag = 'scoped memory for tpu_custom_call.1']
    #allocation5 [shape = 's32[1]{0}', space=sflag, size = 0x4, scoped, tag = 'scoped memory for tpu_custom_call.1']
    #allocation6 [shape = 'u8[16384]{0}', space=vmem, size = 0x4000, scoped, tag = 'input window, operand 1, single buffered']
    #allocation7 [shape = 's32[1]{0}', space=sflag, size = 0x4, scoped, tag = 'scoped memory for tpu_custom_call.1']
    #allocation8 [shape = 'u8[4096]{0}', space=vmem, size = 0x1000, scoped, tag = 'output window, operand 0, single buffered']
    %7 = vsyncpa [#allocation4], 0
    %8 = vsyncpa [#allocation7], 0
    %9 = vsyncpa [#allocation5], 0
    // Predicated region
    $region2: #{tpu_custom_call.1} parent=1 // pred_check
      _
    $region3: #{tpu_custom_call.1} parent=1 // pred_check_branch
      %11 = sbr.rel (0) target = $region5
    $region4: #{tpu_custom_call.1} parent=1 // pred_region
      %s13 = ssub.s32 128, 128
      %14 = vsyncadd [#allocation4], %s13
      %s16 = sshll.u32 [#allocation3], 4
      %s17 = int_to_ptr.vmem [resolvable:$true] %s16
      %19 = dma.hbm_to_vmem [thread:$0]  %s0, 128, %s17, [#allocation4]
    $region5: #{tpu_custom_call.1} parent=1 // pred_fallthru
      _
    // Predicated region
    $region6: #{tpu_custom_call.1} parent=1 // pred_check
      _
    $region7: #{tpu_custom_call.1} parent=1 // pred_check_branch
      %21 = sbr.rel (0) target = $region9
    $region8: #{tpu_custom_call.1} parent=1 // pred_region
      %s23 = ssub.s32 512, 512
      %24 = vsyncadd [#allocation7], %s23
      %s25 = sshll.u32 [#allocation6], 4
      %s26 = int_to_ptr.vmem [resolvable:$true] %s25
      %31 = dma.hbm_to_vmem [thread:$0]  %s1, 512, %s26, [#allocation7], 128, 128, 8
    $region9: #{tpu_custom_call.1} parent=1 // pred_fallthru
      _
    // Predicated region
    $region10: #{tpu_custom_call.1} parent=1 // pred_check
      _
    $region11: #{tpu_custom_call.1} parent=1 // pred_check_branch
      %33 = sbr.rel (0) target = $region13
    $region12: #{tpu_custom_call.1} parent=1 // pred_region
      %34 = dma.done [#allocation4], 128
    $region13: #{tpu_custom_call.1} parent=1 // pred_fallthru
      _
    // Predicated region
    $region14: #{tpu_custom_call.1} parent=1 // pred_check
      _
    $region15: #{tpu_custom_call.1} parent=1 // pred_check_branch
      %36 = sbr.rel (0) target = $region17
    $region16: #{tpu_custom_call.1} parent=1 // pred_region
      %37 = dma.done [#allocation7], 512
    $region17: #{tpu_custom_call.1} parent=1 // pred_fallthru
      _
    %v38 = vld [vmem:[#allocation3] sm:$0xff]
    %v39 = vmul.f32 %v38, %v38
    %vm40 = vcmask 261120
    %v41 = vsel %vm40, %v39, 0.0
    %42 = vadd.xlane.f32.xlu0 %v41
    %v43 = vpop.xlane.xlu0 %42
    %v44 = vrsqrt.pop %v43
    %v45 = vmul.f32 %v44, 64.0
    %v46 = vld [vmem:[#allocation6] sm:$0xff]
    %v47 = vld [vmem:[#allocation6 + $0x8] sm:$0xff]
    %v48 = vld [vmem:[#allocation6 + $0x10] sm:$0xff]
    %v49 = vld [vmem:[#allocation6 + $0x18] sm:$0xff]
    %v50 = vmul.f32 %v46, %v46
    %v51 = vmul.f32 %v47, %v47
    %v52 = vmul.f32 %v48, %v48
    %v53 = vmul.f32 %v49, %v49
    %v54 = vadd.f32 %v50, %v51
    %v55 = vadd.f32 %v54, %v52
    %v56 = vadd.f32 %v55, %v53
    %v57 = vrot.slane %v56, 4
    %v58 = vadd.f32 %v56, %v57
    %v59 = vrot.slane %v58, 2
    %v60 = vadd.f32 %v58, %v59
    %v61 = vrot.slane %v60, 1
    %v62 = vadd.f32 %v60, %v61
    %v63 = vrsqrt.pop %v62
    %v65 = vsel %vm40, %v38, 0
    %67 = vmatprep.subr.mxu0 0.0
    %68 = vmatpush1.msra.mxu0 0.0
    %69 = vmatprep.subr.mxu0 0.0
    %70 = vmatpush1.msra.mxu0 0.0
    %71 = vmatprep.subr.mxu0 0.0
    %72 = vmatpush1.msra.mxu0 0.0
    %73 = vmatprep.subr.mxu0 0.0
    %74 = vmatpush1.msra.mxu0 0.0
    %75 = vmatprep.subr.mxu0 0.0
    %76 = vmatpush1.msra.mxu0 0.0
    %77 = vmatprep.subr.mxu0 0.0
    %78 = vmatpush1.msra.mxu0 0.0
    %79 = vmatprep.subr.mxu0 0.0
    %80 = vmatpush1.msra.mxu0 0.0
    %81 = vmatprep.subr.mxu0 0.0
    %82 = vmatpush1.msra.mxu0 0.0
    %83 = vmatprep.subr.mxu0 0.0
    %84 = vmatpush1.msra.mxu0 0.0
    %85 = vmatprep.subr.mxu0 0.0
    %86 = vmatpush1.msra.mxu0 0.0
    %87 = vmatprep.subr.mxu0 0.0
    %88 = vmatpush1.msra.mxu0 0.0
    %89 = vmatprep.subr.mxu0 0.0
    %90 = vmatpush1.msra.mxu0 0.0
    %91 = vmatprep.subr.mxu0 0.0
    %92 = vmatpush1.msra.mxu0 %v49
    %93 = vmatprep.subr.mxu0 0.0
    %94 = vmatpush1.msra.mxu0 %v48
    %95 = vmatprep.subr.mxu0 0.0
    %96 = vmatpush1.msra.mxu0 %v47
    %97 = vmatprep.subr.mxu0 0.0
    %98 = vmatpush1.msra.mxu0 %v46
    %99 = vmatprep.subr.mxu0 0.0
    %100 = vmatpush2.msra.mxu0 0.0
    %101 = vmatprep.subr.mxu0 0.0
    %102 = vmatpush2.msra.mxu0 0.0
    %103 = vmatprep.subr.mxu0 0.0
    %104 = vmatpush2.msra.mxu0 0.0
    %105 = vmatprep.subr.mxu0 0.0
    %106 = vmatpush2.msra.mxu0 0.0
    %107 = vmatprep.subr.mxu0 0.0
    %108 = vmatpush2.msra.mxu0 0.0
    %109 = vmatprep.subr.mxu0 0.0
    %110 = vmatpush2.msra.mxu0 0.0
    %111 = vmatprep.subr.mxu0 0.0
    %112 = vmatpush2.msra.mxu0 0.0
    %113 = vmatprep.subr.mxu0 0.0
    %114 = vmatpush2.msra.mxu0 0.0
    %115 = vmatprep.subr.mxu0 0.0
    %116 = vmatpush2.msra.mxu0 0.0
    %117 = vmatprep.subr.mxu0 0.0
    %118 = vmatpush2.msra.mxu0 0.0
    %119 = vmatprep.subr.mxu0 0.0
    %120 = vmatpush2.msra.mxu0 0.0
    %121 = vmatprep.subr.mxu0 0.0
    %122 = vmatpush2.msra.mxu0 0.0
    %123 = vmatprep.subr.mxu0 0.0
    %124 = vmatpush2.msra.mxu0 0.0
    %125 = vmatprep.subr.mxu0 0.0
    %126 = vmatpush2.msra.mxu0 0.0
    %127 = vmatprep.subr.mxu0 0.0
    %128 = vmatpush2.msra.mxu0 0.0
    %129 = vmatprep.subr.mxu0 0.0
    %130 = vmatpush2.msra.mxu0 0.0
    %131 = vmatprep.mubr.f32.mxu0 0.0
    %132 = vmatmul.mubr.f32.gmra.mxu0 %v65
    %v133 = vpop.f32.mrf.mxu0
    %v134 = vadd.f32 0.0, %v133
    %v135 = vpop.f32.mrf.mxu0
    %136 = vdwg.mxu0
    %v137 = vmul.f32 %v134, %v45
    %v138 = vmul.f32 %v137, %v63
    %v139 = vmax.f32 %v138, -64.0
    %v140 = vmin.f32 %v139, 64.0
    %141 = vst [vmem:[#allocation8] sm:$0xff] %v140
    // Predicated region
    $region18: #{tpu_custom_call.1} parent=1 // pred_check
      _
    $region19: #{tpu_custom_call.1} parent=1 // pred_check_branch
      %143 = sbr.rel (0) target = $region21
    $region20: #{tpu_custom_call.1} parent=1 // pred_region
      %s145 = ssub.s32 128, 128
      %146 = vsyncadd [#allocation5], %s145
      %s148 = sshll.u32 [#allocation8], 4
      %s149 = int_to_ptr.vmem [resolvable:$true] %s148
      %151 = dma.vmem_to_hbm [thread:$0]  %s149, 128, %s2, [#allocation5]
    $region21: #{tpu_custom_call.1} parent=1 // pred_fallthru
      _
    // Predicated region
    $region22: #{tpu_custom_call.1} parent=1 // pred_check
      _
    $region23: #{tpu_custom_call.1} parent=1 // pred_check_branch
      %153 = sbr.rel (0) target = $region25
    $region24: #{tpu_custom_call.1} parent=1 // pred_region
      %154 = dma.done [#allocation5], 128
    $region25: #{tpu_custom_call.1} parent=1 // pred_fallthru
      _
    %155 = vsyncpa [#allocation4], 1
    %156 = vsyncpa [#allocation7], 1
    %157 = vsyncpa [#allocation5], 1

</llo_original>
